<compile_context>
chip_gen: v5e
topology: v5e:2x2
jax: 0.10.0
libtpu: 0.0.40
codegen_flags: <defaults>
</compile_context>

<pallas_src>
import functools
import math

import jax
import jax.numpy as jnp
from jax.experimental import pallas as pl
from jax.experimental.pallas import tpu as pltpu

# TODO(synk): the original module falls back to `config.threshold` (undefined
# here); we expose `threshold` as an explicit argument with a fixed default.
DEFAULT_THRESHOLD = 127.5          # threshold in the *scaled* (x*255) domain

_LANES = 128                       # vreg lane width
_MAX_BLOCK_ROWS = 2048             # 2048*128*4B = 1 MiB per input per grid step


def _round_up(x, m):
    return ((x + m - 1) // m) * m


def _rscore_kernel(x_ref, t_ref, tp_ref, cp_ref, ct_ref,
                   tp_acc, cp_acc, ct_acc, *, thr, block_rows):
    """Accumulate per-batch partial counts.

    x_ref/t_ref : (1, block_rows, 128) f32 blocks of prediction / target.
    *_ref       : (1, 8, 128) f32 outputs (lane/sublane partial sums per batch).
    *_acc       : (8, 128) f32 VMEM accumulators carried over the chunk axis.
    """
    c = pl.program_id(1)

    @pl.when(c == 0)
    def _():
        tp_acc[...] = jnp.zeros_like(tp_acc)
        cp_acc[...] = jnp.zeros_like(cp_acc)
        ct_acc[...] = jnp.zeros_like(ct_acc)

    xs = x_ref[0]                      # (block_rows, 128) prediction
    ts = t_ref[0]                      # (block_rows, 128) target

    # x*255 >= thr  <=>  x >= thr/255 : the x255 scale is folded into `thr`.
    above_t = ts >= thr
    above_p = xs >= thr

    one = jnp.float32(1.0)
    zero = jnp.float32(0.0)
    tp_v = jnp.where(jnp.logical_and(above_t, above_p), one, zero)   # TP
    cp_v = jnp.where(above_p, one, zero)                             # count aboveP
    ct_v = jnp.where(above_t, one, zero)                             # count aboveT

    # Fold the block down to a single (8,128) vreg with pure VPU adds
    # (no per-step cross-lane reduce; that happens once in the wrapper).
    k = block_rows // 8
    tp_acc[...] += jnp.sum(tp_v.reshape(k, 8, _LANES), axis=0)
    cp_acc[...] += jnp.sum(cp_v.reshape(k, 8, _LANES), axis=0)
    ct_acc[...] += jnp.sum(ct_v.reshape(k, 8, _LANES), axis=0)

    @pl.when(c == pl.num_programs(1) - 1)
    def _():
        tp_ref[0] = tp_acc[...]
        cp_ref[0] = cp_acc[...]
        ct_ref[0] = ct_acc[...]


def rscore_pallas(pred, target, threshold=DEFAULT_THRESHOLD):
    """pred, target: same shape [B, ...]. Returns the scalar f32 R-score."""
    shape = pred.shape
    b = shape[0]
    n = math.prod(shape[1:])
    thr = float(threshold) / 255.0     # fold x*255 into the threshold

    x = pred.reshape(b, n).astype(jnp.float32)
    t = target.reshape(b, n).astype(jnp.float32)

    rows_needed = -(-n // _LANES)
    block_rows = min(_MAX_BLOCK_ROWS, _round_up(rows_needed, 8))
    chunk = block_rows * _LANES

    tail_tp = tail_cp = tail_ct = None
    n_bulk = (n // chunk) * chunk
    if n_bulk == 0:
        # Tiny input: pad up to one chunk. Pad values sit far below any
        # threshold for both tensors -> contribute nothing to TP/cp/ct, and
        # TN+FP is computed from the true N in the wrapper.
        fill = jnp.float32(-3.0e38)
        xb = jnp.pad(x, ((0, 0), (0, chunk - n)), constant_values=fill)
        tb = jnp.pad(t, ((0, 0), (0, chunk - n)), constant_values=fill)
        n_bulk = chunk
    else:
        xb = x[:, :n_bulk]
        tb = t[:, :n_bulk]
        if n_bulk < n:
            # Ragged tail (< one chunk per sample): plain XLA ops instead of
            # materialising padded copies of both full tensors.
            xt = x[:, n_bulk:]
            tt = t[:, n_bulk:]
            at = tt >= thr
            ap = xt >= thr
            tail_tp = jnp.sum(jnp.logical_and(at, ap), axis=1).astype(jnp.float32)
            tail_cp = jnp.sum(ap, axis=1).astype(jnp.float32)
            tail_ct = jnp.sum(at, axis=1).astype(jnp.float32)

    rows = n_bulk // _LANES
    xb = xb.reshape(b, rows, _LANES)
    tb = tb.reshape(b, rows, _LANES)

    grid = (b, rows // block_rows)
    kernel = functools.partial(_rscore_kernel, thr=thr, block_rows=block_rows)

    partial_shape = jax.ShapeDtypeStruct((b, 8, _LANES), jnp.float32)
    in_spec = pl.BlockSpec((1, block_rows, _LANES), lambda i, c: (i, c, 0))
    out_spec = pl.BlockSpec((1, 8, _LANES), lambda i, c: (i, 0, 0))

    tp_p, cp_p, ct_p = pl.pallas_call(
        kernel,
        out_shape=(partial_shape, partial_shape, partial_shape),
        grid_spec=pltpu.PrefetchScalarGridSpec(
            num_scalar_prefetch=0,
            grid=grid,
            in_specs=[in_spec, in_spec],
            out_specs=[out_spec, out_spec, out_spec],
            scratch_shapes=[pltpu.VMEM((8, _LANES), jnp.float32)] * 3,
        ),
        compiler_params=pltpu.CompilerParams(
            # batch axis is independent -> "parallel" (uses both TCs on v7x);
            # chunk axis carries the accumulators -> "arbitrary".
            dimension_semantics=("parallel", "arbitrary"),
        ),
    )(xb, tb)

    tp = jnp.sum(tp_p, axis=(1, 2))
    cp = jnp.sum(cp_p, axis=(1, 2))
    ct = jnp.sum(ct_p, axis=(1, 2))
    if tail_tp is not None:
        tp = tp + tail_tp
        cp = cp + tail_cp
        ct = ct + tail_ct

    fp = cp - tp
    n_f = jnp.float32(n)
    r = tp / ct - fp / (n_f - ct)          # TP/(TP+FN) - FP/(TN+FP)
    return jnp.mean(r)


def _rscore_ref(pred, target, threshold=DEFAULT_THRESHOLD):
    """Pure-JAX transliteration of the PyTorch module (for verification)."""
    t = target.astype(jnp.float32) * 255.0
    x = pred.astype(jnp.float32) * 255.0
    axes = tuple(range(1, t.ndim))
    above_t = t >= threshold
    under_t = t < threshold
    above_p = x >= threshold
    under_p = x < threshold
    tp = jnp.sum(jnp.logical_and(above_t, above_p), axis=axes).astype(jnp.float32)
    fn = jnp.sum(jnp.logical_and(above_t, under_p), axis=axes).astype(jnp.float32)
    tn = jnp.sum(jnp.logical_and(under_t, under_p), axis=axes).astype(jnp.float32)
    fp = jnp.sum(jnp.logical_and(under_t, above_p), axis=axes).astype(jnp.float32)
    r = tp / (tp + fn) - fp / (tn + fp)
    return jnp.mean(r)


if __name__ == "__main__":
    key = jax.random.PRNGKey(0)
    kx, kt = jax.random.split(key)
    # small NCHW inputs consistent with the module's forward
    x = jax.random.uniform(kx, (2, 4, 16, 16), dtype=jnp.float32)
    t = jax.random.uniform(kt, (2, 4, 16, 16), dtype=jnp.float32)

    score = rscore_pallas(x, t, threshold=DEFAULT_THRESHOLD)
    score = jax.block_until_ready(score)

    ref = _rscore_ref(x, t, threshold=DEFAULT_THRESHOLD)
    assert jnp.allclose(score, ref, atol=1e-5, rtol=1e-5), (score, ref)

    print("KERNEL_OK")
</pallas_src>

<mosaic_0001>
module attributes {stable_mosaic.version = 11 : i64} {
  func.func @_rscore_kernel(%arg0: i32, %arg1: i32, %arg2: memref<1x8x128xf32, #tpu.memory_space<vmem>>, %arg3: memref<1x8x128xf32, #tpu.memory_space<vmem>>, %arg4: memref<1x8x128xf32, #tpu.memory_space<vmem>>, %arg5: memref<1x8x128xf32, #tpu.memory_space<vmem>>, %arg6: memref<1x8x128xf32, #tpu.memory_space<vmem>>, %arg7: memref<8x128xf32, #tpu.memory_space<vmem>>, %arg8: memref<8x128xf32, #tpu.memory_space<vmem>>, %arg9: memref<8x128xf32, #tpu.memory_space<vmem>>) attributes {dimension_semantics = [#tpu.dimension_semantics<parallel>, #tpu.dimension_semantics<arbitrary>], iteration_bounds = array<i64: 2, 1>, scalar_prefetch = 0 : i64, scratch_operands = 3 : i64, tpu.core_type = #tpu.core_type<tc>, window_params = [{transform_indices = @transform_0, window_bounds = array<i64: 1, 8, 128>}, {transform_indices = @transform_1, window_bounds = array<i64: 1, 8, 128>}, {transform_indices = @transform_2, window_bounds = array<i64: 1, 8, 128>}, {transform_indices = @transform_3, window_bounds = array<i64: 1, 8, 128>}, {transform_indices = @transform_4, window_bounds = array<i64: 1, 8, 128>}]} {
    %c0_i32 = arith.constant 0 : i32
    %0 = arith.cmpi eq, %arg1, %c0_i32 : i32
    %1 = arith.extui %0 : i1 to i32
    %c0_i32_0 = arith.constant 0 : i32
    %2 = arith.cmpi ne, %1, %c0_i32_0 : i32
    scf.if %2 {
      %cst_30 = arith.constant 0.000000e+00 : f32
      %39 = vector.broadcast %cst_30 : f32 to vector<8x128xf32>
      %c0_31 = arith.constant 0 : index
      %c0_32 = arith.constant 0 : index
      %40 = vector.load %arg7[%c0_31, %c0_32] : memref<8x128xf32, #tpu.memory_space<vmem>>, vector<8x128xf32>
      tpu.vector_store %arg7[%c0_31, %c0_32], %39 {strides = array<i32>} : memref<8x128xf32, #tpu.memory_space<vmem>>, vector<8x128xf32>,
      %cst_33 = arith.constant 0.000000e+00 : f32
      %41 = vector.broadcast %cst_33 : f32 to vector<8x128xf32>
      %c0_34 = arith.constant 0 : index
      %c0_35 = arith.constant 0 : index
      %42 = vector.load %arg8[%c0_34, %c0_35] : memref<8x128xf32, #tpu.memory_space<vmem>>, vector<8x128xf32>
      tpu.vector_store %arg8[%c0_34, %c0_35], %41 {strides = array<i32>} : memref<8x128xf32, #tpu.memory_space<vmem>>, vector<8x128xf32>,
      %cst_36 = arith.constant 0.000000e+00 : f32
      %43 = vector.broadcast %cst_36 : f32 to vector<8x128xf32>
      %c0_37 = arith.constant 0 : index
      %c0_38 = arith.constant 0 : index
      %44 = vector.load %arg9[%c0_37, %c0_38] : memref<8x128xf32, #tpu.memory_space<vmem>>, vector<8x128xf32>
      tpu.vector_store %arg9[%c0_37, %c0_38], %43 {strides = array<i32>} : memref<8x128xf32, #tpu.memory_space<vmem>>, vector<8x128xf32>,
    } else {
    }
    %c0 = arith.constant 0 : index
    %c0_1 = arith.constant 0 : index
    %c0_2 = arith.constant 0 : index
    %3 = vector.load %arg2[%c0, %c0_1, %c0_2] : memref<1x8x128xf32, #tpu.memory_space<vmem>>, vector<1x8x128xf32>
    %4 = vector.shape_cast %3 : vector<1x8x128xf32> to vector<8x128xf32>
    %c0_3 = arith.constant 0 : index
    %c0_4 = arith.constant 0 : index
    %c0_5 = arith.constant 0 : index
    %5 = vector.load %arg3[%c0_3, %c0_4, %c0_5] : memref<1x8x128xf32, #tpu.memory_space<vmem>>, vector<1x8x128xf32>
    %6 = vector.shape_cast %5 : vector<1x8x128xf32> to vector<8x128xf32>
    %cst = arith.constant 5.000000e-01 : f32
    %7 = vector.broadcast %cst : f32 to vector<8x128xf32>
    %8 = arith.cmpf oge, %6, %7 : vector<8x128xf32>
    %cst_6 = arith.constant 5.000000e-01 : f32
    %9 = vector.broadcast %cst_6 : f32 to vector<8x128xf32>
    %10 = arith.cmpf oge, %4, %9 : vector<8x128xf32>
    %11 = arith.andi %8, %10 : vector<8x128xi1>
    %cst_7 = arith.constant 1.000000e+00 : f32
    %cst_8 = arith.constant 0.000000e+00 : f32
    %12 = vector.broadcast %cst_7 : f32 to vector<8x128xf32>
    %13 = vector.broadcast %cst_8 : f32 to vector<8x128xf32>
    %14 = arith.select %11, %12, %13 : vector<8x128xi1>, vector<8x128xf32>
    %cst_9 = arith.constant 1.000000e+00 : f32
    %cst_10 = arith.constant 0.000000e+00 : f32
    %15 = vector.broadcast %cst_9 : f32 to vector<8x128xf32>
    %16 = vector.broadcast %cst_10 : f32 to vector<8x128xf32>
    %17 = arith.select %10, %15, %16 : vector<8x128xi1>, vector<8x128xf32>
    %cst_11 = arith.constant 1.000000e+00 : f32
    %cst_12 = arith.constant 0.000000e+00 : f32
    %18 = vector.broadcast %cst_11 : f32 to vector<8x128xf32>
    %19 = vector.broadcast %cst_12 : f32 to vector<8x128xf32>
    %20 = arith.select %8, %18, %19 : vector<8x128xi1>, vector<8x128xf32>
    %c0_13 = arith.constant 0 : index
    %c0_14 = arith.constant 0 : index
    %21 = vector.load %arg7[%c0_13, %c0_14] : memref<8x128xf32, #tpu.memory_space<vmem>>, vector<8x128xf32>
    %22 = vector.shape_cast %14 : vector<8x128xf32> to vector<1x8x128xf32>
    %cst_15 = arith.constant dense<0.000000e+00> : vector<8x128xf32>
    %23 = vector.multi_reduction <add>, %22, %cst_15 [0] : vector<1x8x128xf32> to vector<8x128xf32>
    %24 = arith.addf %21, %23 : vector<8x128xf32>
    %c0_16 = arith.constant 0 : index
    %c0_17 = arith.constant 0 : index
    %25 = vector.load %arg7[%c0_16, %c0_17] : memref<8x128xf32, #tpu.memory_space<vmem>>, vector<8x128xf32>
    tpu.vector_store %arg7[%c0_16, %c0_17], %24 {strides = array<i32>} : memref<8x128xf32, #tpu.memory_space<vmem>>, vector<8x128xf32>,
    %c0_18 = arith.constant 0 : index
    %c0_19 = arith.constant 0 : index
    %26 = vector.load %arg8[%c0_18, %c0_19] : memref<8x128xf32, #tpu.memory_space<vmem>>, vector<8x128xf32>
    %27 = vector.shape_cast %17 : vector<8x128xf32> to vector<1x8x128xf32>
    %cst_20 = arith.constant dense<0.000000e+00> : vector<8x128xf32>
    %28 = vector.multi_reduction <add>, %27, %cst_20 [0] : vector<1x8x128xf32> to vector<8x128xf32>
    %29 = arith.addf %26, %28 : vector<8x128xf32>
    %c0_21 = arith.constant 0 : index
    %c0_22 = arith.constant 0 : index
    %30 = vector.load %arg8[%c0_21, %c0_22] : memref<8x128xf32, #tpu.memory_space<vmem>>, vector<8x128xf32>
    tpu.vector_store %arg8[%c0_21, %c0_22], %29 {strides = array<i32>} : memref<8x128xf32, #tpu.memory_space<vmem>>, vector<8x128xf32>,
    %c0_23 = arith.constant 0 : index
    %c0_24 = arith.constant 0 : index
    %31 = vector.load %arg9[%c0_23, %c0_24] : memref<8x128xf32, #tpu.memory_space<vmem>>, vector<8x128xf32>
    %32 = vector.shape_cast %20 : vector<8x128xf32> to vector<1x8x128xf32>
    %cst_25 = arith.constant dense<0.000000e+00> : vector<8x128xf32>
    %33 = vector.multi_reduction <add>, %32, %cst_25 [0] : vector<1x8x128xf32> to vector<8x128xf32>
    %34 = arith.addf %31, %33 : vector<8x128xf32>
    %c0_26 = arith.constant 0 : index
    %c0_27 = arith.constant 0 : index
    %35 = vector.load %arg9[%c0_26, %c0_27] : memref<8x128xf32, #tpu.memory_space<vmem>>, vector<8x128xf32>
    tpu.vector_store %arg9[%c0_26, %c0_27], %34 {strides = array<i32>} : memref<8x128xf32, #tpu.memory_space<vmem>>, vector<8x128xf32>,
    %c0_i32_28 = arith.constant 0 : i32
    %36 = arith.cmpi eq, %arg1, %c0_i32_28 : i32
    %37 = arith.extui %36 : i1 to i32
    %c0_i32_29 = arith.constant 0 : i32
    %38 = arith.cmpi ne, %37, %c0_i32_29 : i32
    scf.if %38 {
      %c0_30 = arith.constant 0 : index
      %c0_31 = arith.constant 0 : index
      %39 = vector.load %arg7[%c0_30, %c0_31] : memref<8x128xf32, #tpu.memory_space<vmem>>, vector<8x128xf32>
      %c0_32 = arith.constant 0 : index
      %c0_33 = arith.constant 0 : index
      %c0_34 = arith.constant 0 : index
      %40 = vector.load %arg4[%c0_32, %c0_33, %c0_34] : memref<1x8x128xf32, #tpu.memory_space<vmem>>, vector<1x8x128xf32>
      %41 = vector.shape_cast %40 : vector<1x8x128xf32> to vector<8x128xf32>
      %42 = vector.shape_cast %39 : vector<8x128xf32> to vector<1x8x128xf32>
      tpu.vector_store %arg4[%c0_32, %c0_33, %c0_34], %42 {strides = array<i32>} : memref<1x8x128xf32, #tpu.memory_space<vmem>>, vector<1x8x128xf32>,
      %c0_35 = arith.constant 0 : index
      %c0_36 = arith.constant 0 : index
      %43 = vector.load %arg8[%c0_35, %c0_36] : memref<8x128xf32, #tpu.memory_space<vmem>>, vector<8x128xf32>
      %c0_37 = arith.constant 0 : index
      %c0_38 = arith.constant 0 : index
      %c0_39 = arith.constant 0 : index
      %44 = vector.load %arg5[%c0_37, %c0_38, %c0_39] : memref<1x8x128xf32, #tpu.memory_space<vmem>>, vector<1x8x128xf32>
      %45 = vector.shape_cast %44 : vector<1x8x128xf32> to vector<8x128xf32>
      %46 = vector.shape_cast %43 : vector<8x128xf32> to vector<1x8x128xf32>
      tpu.vector_store %arg5[%c0_37, %c0_38, %c0_39], %46 {strides = array<i32>} : memref<1x8x128xf32, #tpu.memory_space<vmem>>, vector<1x8x128xf32>,
      %c0_40 = arith.constant 0 : index
      %c0_41 = arith.constant 0 : index
      %47 = vector.load %arg9[%c0_40, %c0_41] : memref<8x128xf32, #tpu.memory_space<vmem>>, vector<8x128xf32>
      %c0_42 = arith.constant 0 : index
      %c0_43 = arith.constant 0 : index
      %c0_44 = arith.constant 0 : index
      %48 = vector.load %arg6[%c0_42, %c0_43, %c0_44] : memref<1x8x128xf32, #tpu.memory_space<vmem>>, vector<1x8x128xf32>
      %49 = vector.shape_cast %48 : vector<1x8x128xf32> to vector<8x128xf32>
      %50 = vector.shape_cast %47 : vector<8x128xf32> to vector<1x8x128xf32>
      tpu.vector_store %arg6[%c0_42, %c0_43, %c0_44], %50 {strides = array<i32>} : memref<1x8x128xf32, #tpu.memory_space<vmem>>, vector<1x8x128xf32>,
    } else {
    }
    return
  }
  func.func @transform_0(%arg0: i32, %arg1: i32) -> (i32, i32, i32) {
    %c0_i32 = arith.constant 0 : i32
    %c0_i32_0 = arith.constant 0 : i32
    return %arg0, %arg1, %c0_i32 : i32, i32, i32
  }
  func.func @transform_1(%arg0: i32, %arg1: i32) -> (i32, i32, i32) {
    %c0_i32 = arith.constant 0 : i32
    %c0_i32_0 = arith.constant 0 : i32
    return %arg0, %arg1, %c0_i32 : i32, i32, i32
  }
  func.func @transform_2(%arg0: i32, %arg1: i32) -> (i32, i32, i32) {
    %c0_i32 = arith.constant 0 : i32
    %c0_i32_0 = arith.constant 0 : i32
    %c0_i32_1 = arith.constant 0 : i32
    return %arg0, %c0_i32, %c0_i32_0 : i32, i32, i32
  }
  func.func @transform_3(%arg0: i32, %arg1: i32) -> (i32, i32, i32) {
    %c0_i32 = arith.constant 0 : i32
    %c0_i32_0 = arith.constant 0 : i32
    %c0_i32_1 = arith.constant 0 : i32
    return %arg0, %c0_i32, %c0_i32_0 : i32, i32, i32
  }
  func.func @transform_4(%arg0: i32, %arg1: i32) -> (i32, i32, i32) {
    %c0_i32 = arith.constant 0 : i32
    %c0_i32_0 = arith.constant 0 : i32
    %c0_i32_1 = arith.constant 0 : i32
    return %arg0, %c0_i32, %c0_i32_0 : i32, i32, i32
  }
}

</mosaic_0001>

<llo_original>
// kernel: tpu_custom_call.1
$region0: #{tpu_custom_call.1}
  #allocation0 [shape = 'u32[]', space=smem, size = 0x4, offset = 0x4, fixed_abs, tag = 'smem constant byte address 0x4 - core index']
  #allocation1 [shape = 'u32[72,128]{1,0:T(1,128)}', space=vmem, size = 0x9000, scoped, tag = 'internal scratch']
  #allocation2 [shape = 'f32[8,128]{1,0:T(8,128)}', space=vmem, size = 0x1000, scoped, tag = 'scratch operand']
  #allocation3 [shape = 'f32[8,128]{1,0:T(8,128)}', space=vmem, size = 0x1000, scoped, tag = 'scratch operand']
  #allocation4 [shape = 'f32[8,128]{1,0:T(8,128)}', space=vmem, size = 0x1000, scoped, tag = 'scratch operand']
  %s0 = inlined_call_operand.hbm [shape: f32[2,8,128], index: 0, kind: input, shape index: {}]
  %s1 = inlined_call_operand.hbm [shape: f32[2,8,128], index: 1, kind: input, shape index: {}]
  %s2 = inlined_call_operand.hbm [shape: f32[2,8,128], index: 2, kind: output, shape index: {0}]
  %s3 = inlined_call_operand.hbm [shape: f32[2,8,128], index: 3, kind: output, shape index: {1}]
  %s4 = inlined_call_operand.hbm [shape: f32[2,8,128], index: 4, kind: output, shape index: {2}]
  %5 = xla_tuple %s2, %s3, %s4
  %s6 = sld [smem:[#allocation0]]
  $region73: #{tpu_custom_call.1} parent=0
    _
  %s8 = ssub.s32 1, %s6
  %s9 = scalar_select 0, %s8, %s6
  $region1: #{tpu_custom_call.1} parent=0
    #allocation5 [shape = 'u8[8192]{0}', space=vmem, size = 0x2000, scoped, tag = 'input window, operand 0']
    #allocation6 [shape = 's32[2]{0}', space=sflag, size = 0x8, scoped, tag = 'scoped memory for tpu_custom_call.1']
    #allocation7 [shape = 's32[2]{0}', space=sflag, size = 0x8, scoped, tag = 'scoped memory for tpu_custom_call.1']
    #allocation8 [shape = 'u8[8192]{0}', space=vmem, size = 0x2000, scoped, tag = 'input window, operand 1']
    #allocation9 [shape = 's32[2]{0}', space=sflag, size = 0x8, scoped, tag = 'scoped memory for tpu_custom_call.1']
    #allocation10 [shape = 'u8[8192]{0}', space=vmem, size = 0x2000, scoped, tag = 'output window, operand 0']
    #allocation11 [shape = 'u8[8192]{0}', space=vmem, size = 0x2000, scoped, tag = 'output window, operand 1']
    #allocation12 [shape = 's32[2]{0}', space=sflag, size = 0x8, scoped, tag = 'scoped memory for tpu_custom_call.1']
    #allocation13 [shape = 'u8[8192]{0}', space=vmem, size = 0x2000, scoped, tag = 'output window, operand 2']
    %10 = vsyncpa [#allocation6], 0
    %s11 = scalar_lea.sflag [#allocation6], 1
    %12 = vsyncpa %s11, 0
    %13 = vsyncpa [#allocation9], 0
    %s14 = scalar_lea.sflag [#allocation9], 1
    %15 = vsyncpa %s14, 0
    %16 = vsyncpa [#allocation7], 0
    %s17 = scalar_lea.sflag [#allocation7], 1
    %18 = vsyncpa %s17, 0
    %19 = vsyncpa [#allocation12], 0
    %s20 = scalar_lea.sflag [#allocation12], 1
    %21 = vsyncpa %s20, 0
    loop: start=0, step=1, limit=4
    $region2: #{tpu_custom_call.1} parent=1 // loop_pre_header
      _
    $region3: #{tpu_custom_call.1} parent=1 // loop_header
      %s23 = sphi 0, %s27
      %p24 = scmp.ge.s32.totalorder %s23, 4
      %s30 = sphi 0, %s42
      %s31 = sphi 0, %s38
      %s32 = sphi 0, %s30
      %s33 = sphi 0, %s31
      %s34 = sphi 0, %s32
      %s35 = sphi 0, %s33
      %s47 = sphi 0, %s49
      %s50 = sphi 0, %s47
      %s51 = sphi 0, %s50
      %s67 = sphi 0, %s51
      %s75 = sphi 0, %s77
      %s78 = sphi 0, %s75
      %s79 = sphi 0, %s78
      %s95 = sphi 0, %s79
      %s101 = sphi 0, %s103
      %s104 = sphi 0, %s101
      %s105 = sphi 0, %s104
      %s121 = sphi 0, %s105
      %s127 = sphi 0, %s129
      %s130 = sphi 0, %s127
      %s131 = sphi 0, %s130
      %s147 = sphi 0, %s131
      %s153 = sphi 0, %s155
      %s156 = sphi 0, %s153
      %s157 = sphi 0, %s156
      %s173 = sphi 0, %s157
    $region4: #{tpu_custom_call.1} parent=1 // loop_header_branch
      %26 = sbr.rel (%p24) target = $region8
    $region5: #{tpu_custom_call.1} parent=1 // loop_body
      %s28 = ssub.s32 %s23, 1
      %s29 = ssub.s32 %s23, 2
      %s36 = sadd.s32 1, %s31
      %p37 = scmp.ge.s32.totalorder %s36, 1
      %s38 = scalar_select %p37, 0, %s36
      %s39 = sadd.s32 1, %s30
      %s40 = scalar_select %p37, %s39, %s30
      %p41 = scmp.ge.s32.totalorder %s40, 2
      %s42 = scalar_select %p41, 0, %s40
      %s43 = ssub.s32 %s30, %s42
      %s44 = ssub.s32 %s31, %s38
      %s45 = sor.u32 %s43, %s44
      %p46 = scmp.eq.s32.totalorder %s45, 0
      %s48 = sadd.s32 %s47, 1
      %s49 = scalar_select %p46, %s47, %s48
      %p52 = pneg %p46
      %p53 = scmp.eq.s32.totalorder %s23, 1
      %p54 = por %p52, %p53
      %p55 = scmp.ne.s32.totalorder %s47, %s50
      %p56 = scmp.eq.s32.totalorder %s23, 0
      %p57 = por %p55, %p56
      %p58 = scmp.ne.s32.totalorder %s47, %s50
      %p59 = scmp.eq.s32.totalorder %s28, 1
      %p60 = por %p58, %p59
      %p61 = scmp.ne.s32.totalorder %s50, %s51
      %p62 = scmp.eq.s32.totalorder %s28, 0
      %p63 = por %p61, %p62
      %p64 = scmp.ne.s32.totalorder %s50, %s51
      %p65 = scmp.eq.s32.totalorder %s29, 1
      %p66 = por %p64, %p65
      %p68 = scmp.ne.s32.totalorder %s51, %s67
      %p69 = scmp.eq.s32.totalorder %s29, 0
      %p70 = por %p68, %p69
      %s71 = ssub.s32 %s30, %s42
      %s72 = ssub.s32 %s31, %s38
      %s73 = sor.u32 %s71, %s72
      %p74 = scmp.eq.s32.totalorder %s73, 0
      %s76 = sadd.s32 %s75, 1
      %s77 = scalar_select %p74, %s75, %s76
      %p80 = pneg %p74
      %p81 = scmp.eq.s32.totalorder %s23, 1
      %p82 = por %p80, %p81
      %p83 = scmp.ne.s32.totalorder %s75, %s78
      %p84 = scmp.eq.s32.totalorder %s23, 0
      %p85 = por %p83, %p84
      %p86 = scmp.ne.s32.totalorder %s75, %s78
      %p87 = scmp.eq.s32.totalorder %s28, 1
      %p88 = por %p86, %p87
      %p89 = scmp.ne.s32.totalorder %s78, %s79
      %p90 = scmp.eq.s32.totalorder %s28, 0
      %p91 = por %p89, %p90
      %p92 = scmp.ne.s32.totalorder %s78, %s79
      %p93 = scmp.eq.s32.totalorder %s29, 1
      %p94 = por %p92, %p93
      %p96 = scmp.ne.s32.totalorder %s79, %s95
      %p97 = scmp.eq.s32.totalorder %s29, 0
      %p98 = por %p96, %p97
      %s99 = ssub.s32 %s30, %s42
      %p100 = scmp.eq.s32.totalorder %s99, 0
      %s102 = sadd.s32 %s101, 1
      %s103 = scalar_select %p100, %s101, %s102
      %p106 = pneg %p100
      %p107 = scmp.eq.s32.totalorder %s23, 1
      %p108 = por %p106, %p107
      %p109 = scmp.ne.s32.totalorder %s101, %s104
      %p110 = scmp.eq.s32.totalorder %s23, 0
      %p111 = por %p109, %p110
      %p112 = scmp.ne.s32.totalorder %s101, %s104
      %p113 = scmp.eq.s32.totalorder %s28, 1
      %p114 = por %p112, %p113
      %p115 = scmp.ne.s32.totalorder %s104, %s105
      %p116 = scmp.eq.s32.totalorder %s28, 0
      %p117 = por %p115, %p116
      %p118 = scmp.ne.s32.totalorder %s104, %s105
      %p119 = scmp.eq.s32.totalorder %s29, 1
      %p120 = por %p118, %p119
      %p122 = scmp.ne.s32.totalorder %s105, %s121
      %p123 = scmp.eq.s32.totalorder %s29, 0
      %p124 = por %p122, %p123
      %s125 = ssub.s32 %s30, %s42
      %p126 = scmp.eq.s32.totalorder %s125, 0
      %s128 = sadd.s32 %s127, 1
      %s129 = scalar_select %p126, %s127, %s128
      %p132 = pneg %p126
      %p133 = scmp.eq.s32.totalorder %s23, 1
      %p134 = por %p132, %p133
      %p135 = scmp.ne.s32.totalorder %s127, %s130
      %p136 = scmp.eq.s32.totalorder %s23, 0
      %p137 = por %p135, %p136
      %p138 = scmp.ne.s32.totalorder %s127, %s130
      %p139 = scmp.eq.s32.totalorder %s28, 1
      %p140 = por %p138, %p139
      %p141 = scmp.ne.s32.totalorder %s130, %s131
      %p142 = scmp.eq.s32.totalorder %s28, 0
      %p143 = por %p141, %p142
      %p144 = scmp.ne.s32.totalorder %s130, %s131
      %p145 = scmp.eq.s32.totalorder %s29, 1
      %p146 = por %p144, %p145
      %p148 = scmp.ne.s32.totalorder %s131, %s147
      %p149 = scmp.eq.s32.totalorder %s29, 0
      %p150 = por %p148, %p149
      %s151 = ssub.s32 %s30, %s42
      %p152 = scmp.eq.s32.totalorder %s151, 0
      %s154 = sadd.s32 %s153, 1
      %s155 = scalar_select %p152, %s153, %s154
      %p158 = pneg %p152
      %p159 = scmp.eq.s32.totalorder %s23, 1
      %p160 = por %p158, %p159
      %p161 = scmp.ne.s32.totalorder %s153, %s156
      %p162 = scmp.eq.s32.totalorder %s23, 0
      %p163 = por %p161, %p162
      %p164 = scmp.ne.s32.totalorder %s153, %s156
      %p165 = scmp.eq.s32.totalorder %s28, 1
      %p166 = por %p164, %p165
      %p167 = scmp.ne.s32.totalorder %s156, %s157
      %p168 = scmp.eq.s32.totalorder %s28, 0
      %p169 = por %p167, %p168
      %p170 = scmp.ne.s32.totalorder %s156, %s157
      %p171 = scmp.eq.s32.totalorder %s29, 1
      %p172 = por %p170, %p171
      %p174 = scmp.ne.s32.totalorder %s157, %s173
      %p175 = scmp.eq.s32.totalorder %s29, 0
      %p176 = por %p174, %p175
      %p177 = scmp.le.s32.totalorder 1, %s23
      %p178 = scmp.lt.s32.totalorder %s23, 3
      %p179 = pnand %p177, %p178
      %p180 = pneg %p179
      // Predicated region
      $region9: #{tpu_custom_call.1} parent=5 // pred_check
        _
      $region10: #{tpu_custom_call.1} parent=5 // pred_check_branch
        %182 = sbr.rel (%p179) target = $region12
      $region11: #{tpu_custom_call.1} parent=5 // pred_region
        %s183 = ssub.s32 %s23, 1
      $region12: #{tpu_custom_call.1} parent=5 // pred_fallthru
        _
      %p184 = scmp.lt.s32.totalorder %s23, 2
      // Predicated region
      $region13: #{tpu_custom_call.1} parent=5 // pred_check
        %p185 = pneg %p184
      $region14: #{tpu_custom_call.1} parent=5 // pred_check_branch
        %187 = sbr.rel (%p185) target = $region16
      $region15: #{tpu_custom_call.1} parent=5 // pred_region
        // Predicated region
        $region17: #{tpu_custom_call.1} parent=15 // pred_check
          %p188 = pneg %p57
        $region18: #{tpu_custom_call.1} parent=15 // pred_check_branch
          %190 = sbr.rel (%p188) target = $region20
        $region19: #{tpu_custom_call.1} parent=15 // pred_region
          %s191 = sand.u32 %s47, 1
          %s192 = scalar_lea.sflag [#allocation6], %s191
          %s193 = sand.u32 %s47, 1
          %s194 = smul.addr %s193, 8
          %s195 = scalar_lea.vmem [#allocation5], %s194
          %197 = vsyncadd %s192, 0
          %s198 = sadd.s32 %s31, %s30
          %s199 = smul.addr %s198, 8
          %s200 = scalar_lea.hbm %s0, %s199
          %s202 = sshll.u32 %s200, 4
          %s203 = int_to_ptr.hbm [resolvable:$true] %s202
          %s204 = sshll.u32 %s195, 4
          %s205 = int_to_ptr.vmem [resolvable:$true] %s204
          %207 = dma.hbm_to_vmem [thread:$0]  %s203, 128, %s205, %s192
        $region20: #{tpu_custom_call.1} parent=15 // pred_fallthru
          _
        // Predicated region
        $region21: #{tpu_custom_call.1} parent=15 // pred_check
          %p208 = pneg %p85
        $region22: #{tpu_custom_call.1} parent=15 // pred_check_branch
          %210 = sbr.rel (%p208) target = $region24
        $region23: #{tpu_custom_call.1} parent=15 // pred_region
          %s211 = sand.u32 %s75, 1
          %s212 = scalar_lea.sflag [#allocation9], %s211
          %s213 = sand.u32 %s75, 1
          %s214 = smul.addr %s213, 8
          %s215 = scalar_lea.vmem [#allocation8], %s214
          %217 = vsyncadd %s212, 0
          %s218 = sadd.s32 %s31, %s30
          %s219 = smul.addr %s218, 8
          %s220 = scalar_lea.hbm %s1, %s219
          %s222 = sshll.u32 %s220, 4
          %s223 = int_to_ptr.hbm [resolvable:$true] %s222
          %s224 = sshll.u32 %s215, 4
          %s225 = int_to_ptr.vmem [resolvable:$true] %s224
          %227 = dma.hbm_to_vmem [thread:$0]  %s223, 128, %s225, %s212
        $region24: #{tpu_custom_call.1} parent=15 // pred_fallthru
          _
      $region16: #{tpu_custom_call.1} parent=5 // pred_fallthru
        _
      %p228 = scmp.le.s32.totalorder 1, %s23
      %p229 = scmp.lt.s32.totalorder %s23, 3
      %p230 = pnand %p228, %p229
      %p231 = pneg %p230
      // Predicated region
      $region25: #{tpu_custom_call.1} parent=5 // pred_check
        _
      $region26: #{tpu_custom_call.1} parent=5 // pred_check_branch
        %233 = sbr.rel (%p230) target = $region28
      $region27: #{tpu_custom_call.1} parent=5 // pred_region
        %s234 = ssub.s32 %s23, 1
        %s235 = sand.u32 %s50, 1
        %s236 = scalar_lea.sflag [#allocation6], %s235
        %s237 = sand.u32 %s50, 1
        %s238 = smul.addr %s237, 8
        %s239 = scalar_lea.vmem [#allocation5], %s238
        // Predicated region
        $region29: #{tpu_custom_call.1} parent=27 // pred_check
          %p240 = pneg %p63
        $region30: #{tpu_custom_call.1} parent=27 // pred_check_branch
          %242 = sbr.rel (%p240) target = $region32
        $region31: #{tpu_custom_call.1} parent=27 // pred_region
          %244 = dma.done %s236, 128
        $region32: #{tpu_custom_call.1} parent=27 // pred_fallthru
          _
        %s245 = sand.u32 %s78, 1
        %s246 = scalar_lea.sflag [#allocation9], %s245
        %s247 = sand.u32 %s78, 1
        %s248 = smul.addr %s247, 8
        %s249 = scalar_lea.vmem [#allocation8], %s248
        // Predicated region
        $region33: #{tpu_custom_call.1} parent=27 // pred_check
          %p250 = pneg %p91
        $region34: #{tpu_custom_call.1} parent=27 // pred_check_branch
          %252 = sbr.rel (%p250) target = $region36
        $region35: #{tpu_custom_call.1} parent=27 // pred_region
          %254 = dma.done %s246, 128
        $region36: #{tpu_custom_call.1} parent=27 // pred_fallthru
          _
        %s255 = sand.u32 %s50, 1
        %s256 = scalar_lea.sflag [#allocation6], %s255
        %s257 = sand.u32 %s50, 1
        %s258 = smul.addr %s257, 8
        %s259 = scalar_lea.vmem [#allocation5], %s258
        %p260 = pneg %p63
        %p261 = pneg %p60
        %s262 = sand.u32 %s78, 1
        %s263 = scalar_lea.sflag [#allocation9], %s262
        %s264 = sand.u32 %s78, 1
        %s265 = smul.addr %s264, 8
        %s266 = scalar_lea.vmem [#allocation8], %s265
        %p267 = pneg %p91
        %p268 = pneg %p88
        %p269 = pneg %p117
        %p270 = pneg %p114
        %s271 = sand.u32 %s104, 1
        %s272 = scalar_lea.sflag [#allocation7], %s271
        %s273 = sand.u32 %s104, 1
        %s274 = smul.addr %s273, 8
        %s275 = scalar_lea.vmem [#allocation10], %s274
        %p276 = pneg %p143
        %p277 = pneg %p140
        %s278 = sand.u32 %s28, 1
        %s279 = scalar_lea.sflag [#allocation12], %s278
        %s280 = sand.u32 %s130, 1
        %s281 = smul.addr %s280, 8
        %s282 = scalar_lea.vmem [#allocation11], %s281
        %p283 = pneg %p169
        %p284 = pneg %p166
        %s285 = sand.u32 %s28, 1
        %s286 = scalar_lea.sflag [#allocation12], %s285
        %s287 = sand.u32 %s156, 1
        %s288 = smul.addr %s287, 8
        %s289 = scalar_lea.vmem [#allocation13], %s288
        %p290 = scmp.eq.s32.totalorder %s33, 0
        // Predicated region
        $region37: #{tpu_custom_call.1} parent=27 // pred_check
          %p291 = pneg %p290
        $region38: #{tpu_custom_call.1} parent=27 // pred_check_branch
          %293 = sbr.rel (%p291) target = $region40
        $region39: #{tpu_custom_call.1} parent=27 // pred_region
          %294 = vst [vmem:[#allocation2] sm:$0xff] 0.0
          %295 = vst [vmem:[#allocation3] sm:$0xff] 0.0
          %296 = vst [vmem:[#allocation4] sm:$0xff] 0.0
        $region40: #{tpu_custom_call.1} parent=27 // pred_fallthru
          _
        %v297 = vld [vmem:[%s239] sm:$0xff]
        %v298 = vld [vmem:[%s249] sm:$0xff]
        %vm299 = vcmp.ge.f32.partialorder %v298, 0.5
        %vm300 = vcmp.ge.f32.partialorder %v297, 0.5
        %vm301 = vmand %vm299, %vm300
        %v302 = vsel %vm301, 1.0, 0.0
        %v303 = vsel %vm300, 1.0, 0.0
        %v304 = vsel %vm299, 1.0, 0.0
        %v305 = vld [vmem:[#allocation2] sm:$0xff]
        %v306 = vadd.f32 %v302, 0.0
        %v307 = vadd.f32 %v305, %v306
        %308 = vst [vmem:[#allocation2] sm:$0xff] %v307
        %v309 = vld [vmem:[#allocation3] sm:$0xff]
        %v310 = vadd.f32 %v303, 0.0
        %v311 = vadd.f32 %v309, %v310
        %312 = vst [vmem:[#allocation3] sm:$0xff] %v311
        %v313 = vld [vmem:[#allocation4] sm:$0xff]
        %v314 = vadd.f32 %v304, 0.0
        %v315 = vadd.f32 %v313, %v314
        %316 = vst [vmem:[#allocation4] sm:$0xff] %v315
        // Predicated region
        $region41: #{tpu_custom_call.1} parent=27 // pred_check
          %p317 = pneg %p290
        $region42: #{tpu_custom_call.1} parent=27 // pred_check_branch
          %319 = sbr.rel (%p317) target = $region44
        $region43: #{tpu_custom_call.1} parent=27 // pred_region
          %v320 = vld [vmem:[#allocation2] sm:$0xff]
          %321 = vst [vmem:[%s275] sm:$0xff] %v320
          %v322 = vld [vmem:[#allocation3] sm:$0xff]
          %323 = vst [vmem:[%s282] sm:$0xff] %v322
          %v324 = vld [vmem:[#allocation4] sm:$0xff]
          %325 = vst [vmem:[%s289] sm:$0xff] %v324
        $region44: #{tpu_custom_call.1} parent=27 // pred_fallthru
          _
        %s326 = sand.u32 %s104, 1
        %s327 = scalar_lea.sflag [#allocation7], %s326
        %s328 = sand.u32 %s104, 1
        %s329 = smul.addr %s328, 8
        %s330 = scalar_lea.vmem [#allocation10], %s329
        %s331 = sand.u32 %s28, 1
        %s332 = scalar_lea.sflag [#allocation12], %s331
        %s333 = sand.u32 %s130, 1
        %s334 = smul.addr %s333, 8
        %s335 = scalar_lea.vmem [#allocation11], %s334
        %s336 = sand.u32 %s28, 1
        %s337 = scalar_lea.sflag [#allocation12], %s336
        %s338 = sand.u32 %s156, 1
        %s339 = smul.addr %s338, 8
        %s340 = scalar_lea.vmem [#allocation13], %s339
        // Predicated region
        $region45: #{tpu_custom_call.1} parent=27 // pred_check
          %p341 = pneg %p114
        $region46: #{tpu_custom_call.1} parent=27 // pred_check_branch
          %343 = sbr.rel (%p341) target = $region48
        $region47: #{tpu_custom_call.1} parent=27 // pred_region
          %345 = vsyncadd %s327, 0
          %s346 = smul.addr %s32, 8
          %s347 = scalar_lea.hbm %s2, %s346
          %s349 = sshll.u32 %s330, 4
          %s350 = int_to_ptr.vmem [resolvable:$true] %s349
          %s351 = sshll.u32 %s347, 4
          %s352 = int_to_ptr.hbm [resolvable:$true] %s351
          %354 = dma.vmem_to_hbm [thread:$0]  %s350, 128, %s352, %s327
        $region48: #{tpu_custom_call.1} parent=27 // pred_fallthru
          _
        // Predicated region
        $region49: #{tpu_custom_call.1} parent=27 // pred_check
          %p355 = pneg %p140
        $region50: #{tpu_custom_call.1} parent=27 // pred_check_branch
          %357 = sbr.rel (%p355) target = $region52
        $region51: #{tpu_custom_call.1} parent=27 // pred_region
          %359 = vsyncadd %s332, 0
          %s360 = smul.addr %s32, 8
          %s361 = scalar_lea.hbm %s3, %s360
          %s363 = sshll.u32 %s335, 4
          %s364 = int_to_ptr.vmem [resolvable:$true] %s363
          %s365 = sshll.u32 %s361, 4
          %s366 = int_to_ptr.hbm [resolvable:$true] %s365
          %368 = dma.vmem_to_hbm [thread:$0]  %s364, 128, %s366, %s332
        $region52: #{tpu_custom_call.1} parent=27 // pred_fallthru
          _
        // Predicated region
        $region53: #{tpu_custom_call.1} parent=27 // pred_check
          %p369 = pneg %p166
        $region54: #{tpu_custom_call.1} parent=27 // pred_check_branch
          %371 = sbr.rel (%p369) target = $region56
        $region55: #{tpu_custom_call.1} parent=27 // pred_region
          %373 = vsyncadd %s337, 0
          %s374 = smul.addr %s32, 8
          %s375 = scalar_lea.hbm %s4, %s374
          %s377 = sshll.u32 %s340, 4
          %s378 = int_to_ptr.vmem [resolvable:$true] %s377
          %s379 = sshll.u32 %s375, 4
          %s380 = int_to_ptr.hbm [resolvable:$true] %s379
          %382 = dma.vmem_to_hbm [thread:$0]  %s378, 128, %s380, %s337
        $region56: #{tpu_custom_call.1} parent=27 // pred_fallthru
          _
      $region28: #{tpu_custom_call.1} parent=5 // pred_fallthru
        _
      %p383 = scmp.le.s32.totalorder 2, %s23
      // Predicated region
      $region57: #{tpu_custom_call.1} parent=5 // pred_check
        %p384 = pneg %p383
      $region58: #{tpu_custom_call.1} parent=5 // pred_check_branch
        %386 = sbr.rel (%p384) target = $region60
      $region59: #{tpu_custom_call.1} parent=5 // pred_region
        %s387 = ssub.s32 %s23, 2
        // Predicated region
        $region61: #{tpu_custom_call.1} parent=59 // pred_check
          %p388 = pneg %p120
        $region62: #{tpu_custom_call.1} parent=59 // pred_check_branch
          %390 = sbr.rel (%p388) target = $region64
        $region63: #{tpu_custom_call.1} parent=59 // pred_region
          %s391 = sand.u32 %s105, 1
          %s392 = scalar_lea.sflag [#allocation7], %s391
          %s393 = sand.u32 %s105, 1
          %s394 = smul.addr %s393, 8
          %s395 = scalar_lea.vmem [#allocation10], %s394
          %397 = dma.done %s392, 128
        $region64: #{tpu_custom_call.1} parent=59 // pred_fallthru
          _
        // Predicated region
        $region65: #{tpu_custom_call.1} parent=59 // pred_check
          %p398 = pneg %p146
        $region66: #{tpu_custom_call.1} parent=59 // pred_check_branch
          %400 = sbr.rel (%p398) target = $region68
        $region67: #{tpu_custom_call.1} parent=59 // pred_region
          %s401 = sand.u32 %s29, 1
          %s402 = scalar_lea.sflag [#allocation12], %s401
          %s403 = sand.u32 %s131, 1
          %s404 = smul.addr %s403, 8
          %s405 = scalar_lea.vmem [#allocation11], %s404
          %407 = dma.done %s402, 128
        $region68: #{tpu_custom_call.1} parent=59 // pred_fallthru
          _
        // Predicated region
        $region69: #{tpu_custom_call.1} parent=59 // pred_check
          %p408 = pneg %p172
        $region70: #{tpu_custom_call.1} parent=59 // pred_check_branch
          %410 = sbr.rel (%p408) target = $region72
        $region71: #{tpu_custom_call.1} parent=59 // pred_region
          %s411 = sand.u32 %s29, 1
          %s412 = scalar_lea.sflag [#allocation12], %s411
          %s413 = sand.u32 %s157, 1
          %s414 = smul.addr %s413, 8
          %s415 = scalar_lea.vmem [#allocation13], %s414
          %417 = dma.done %s412, 128
        $region72: #{tpu_custom_call.1} parent=59 // pred_fallthru
          _
      $region60: #{tpu_custom_call.1} parent=5 // pred_fallthru
        _
    $region6: #{tpu_custom_call.1} parent=1 // loop_footer
      %s27 = sadd.s32 1, %s23
    $region7: #{tpu_custom_call.1} parent=1 // loop_footer_branch
      %22 = sbr.rel target = $region3
    $region8: #{tpu_custom_call.1} parent=1 // loop_exit
      _
    %418 = vsyncpa [#allocation6], 1
    %s419 = scalar_lea.sflag [#allocation6], 1
    %420 = vsyncpa %s419, 1
    %421 = vsyncpa [#allocation9], 1
    %s422 = scalar_lea.sflag [#allocation9], 1
    %423 = vsyncpa %s422, 1
    %424 = vsyncpa [#allocation7], 1
    %s425 = scalar_lea.sflag [#allocation7], 1
    %426 = vsyncpa %s425, 1
    %427 = vsyncpa [#allocation12], 1
    %s428 = scalar_lea.sflag [#allocation12], 1
    %429 = vsyncpa %s428, 1

</llo_original>
